<compile_context>
chip_gen: v5e
topology: v5e:2x2
jax: 0.10.0
libtpu: 0.0.40
codegen_flags: <defaults>
</compile_context>

<pallas_src>
import functools

import jax
import jax.numpy as jnp
from jax.experimental import pallas as pl
from jax.experimental.pallas import tpu as pltpu


def _round_up(v, m):
    return ((v + m - 1) // m) * m


def _cdiv(a, b):
    return -(-a // b)


def _patch_embed_kernel(x_ref, w_ref, b_ref, o_ref):
    # x_ref: (TM, K_pad) bf16   w_ref: (K_pad, N_pad) bf16  (VMEM-resident)
    # b_ref: (1, N_pad) f32     o_ref: (TM, N_pad) out_dtype
    acc = jnp.dot(x_ref[...], w_ref[...], preferred_element_type=jnp.float32)
    o_ref[...] = (acc + b_ref[...]).astype(o_ref.dtype)


def _pick_tm(M, K_pad, N_pad, out_itemsize):
    """Row-tile size: amortize ~0.35us/grid-step overhead, stay in VMEM budget."""
    if M <= 512:
        # Single block, rounded to bf16 sublane packing (16 rows), no junk pad.
        return _round_up(max(M, 16), 16)
    # >=2 blocks (v7x megacore balance), TM in [512, 2048].
    tm = min(2048, max(512, _round_up(_cdiv(M, 2), 512)))

    def vmem_bytes(t):
        return (2 * t * K_pad * 2          # double-buffered bf16 input tiles
                + 2 * t * N_pad * out_itemsize   # double-buffered output tiles
                + 2 * K_pad * N_pad * 2    # weight (counted double-buffered)
                + N_pad * 4)               # bias

    # Target well under v7x's 32 MiB scoped default (64 MiB physical).
    while tm > 512 and vmem_bytes(tm) > 24 * 1024 * 1024:
        tm //= 2
    return tm


def prepare_patch_embed_params(weight, bias):
    """One-time parameter prep (hoisted off the per-forward hot path).

    weight: (N, C, P, P) PyTorch conv layout; bias: (N,).
    Returns w_p: (K_pad, N_pad) bf16, b_p: (1, N_pad) f32, with K/N padded to
    multiples of 128 only if unaligned (feature order per patch is (C, ph, pw)).
    """
    N, C, P, P2 = weight.shape
    assert P == P2
    K = C * P * P
    K_pad, N_pad = _round_up(K, 128), _round_up(N, 128)
    w2d = weight.reshape(N, K).T.astype(jnp.bfloat16)          # (K, N)
    if (K_pad, N_pad) != (K, N):
        w2d = jnp.pad(w2d, ((0, K_pad - K), (0, N_pad - N)))
    b2d = bias.astype(jnp.float32).reshape(1, N)
    if N_pad != N:
        b2d = jnp.pad(b2d, ((0, 0), (0, N_pad - N)))
    return w2d, b2d


@functools.partial(jax.jit, static_argnames=("patch_size", "num_hiddens", "out_dtype"))
def patch_embedding(x, w_p, b_p, *, patch_size, num_hiddens, out_dtype=jnp.bfloat16):
    """x: (B, C, H, W) NCHW.  w_p/b_p: from prepare_patch_embed_params.
    Returns (B, num_patches, num_hiddens) in out_dtype (bf16 = compute dtype)."""
    B, C, H, W = x.shape
    P = int(patch_size)
    hp, wp = H // P, W // P          # trailing pixels dropped (stride-P conv semantics)
    num_patches = hp * wp
    K = C * P * P
    M = B * num_patches
    N = int(num_hiddens)
    K_pad, N_pad = w_p.shape

    # im2col in bf16 (halves the HBM traffic of this XLA transpose pass).
    # Per-patch feature order is (C, ph, pw) to match the flattened conv weight.
    xb = x[:, :, :hp * P, :wp * P].astype(jnp.bfloat16)
    patches = xb.reshape(B, C, hp, P, wp, P)
    patches = patches.transpose(0, 2, 4, 1, 3, 5).reshape(M, K)
    # TODO(synk): fuse this im2col into the kernel via a manual strided-DMA
    # gather (memory_space=pl.ANY) to remove the remaining pre-kernel HBM pass.

    out_itemsize = jnp.dtype(out_dtype).itemsize
    TM = _pick_tm(M, K_pad, N_pad, out_itemsize)
    grid_m = _cdiv(M, TM)
    M_pad = grid_m * TM

    # Pad only when needed (aligned ViT shapes skip this entirely).
    if M_pad != M or K_pad != K:
        patches = jnp.pad(patches, ((0, M_pad - M), (0, K_pad - K)))

    out = pl.pallas_call(
        _patch_embed_kernel,
        out_shape=jax.ShapeDtypeStruct((M_pad, N_pad), out_dtype),
        grid_spec=pltpu.PrefetchScalarGridSpec(
            num_scalar_prefetch=0,
            grid=(grid_m,),
            in_specs=[
                pl.BlockSpec((TM, K_pad), lambda i: (i, 0)),      # pipelined row tiles
                pl.BlockSpec((K_pad, N_pad), lambda i: (0, 0)),   # VMEM-resident weight
                pl.BlockSpec((1, N_pad), lambda i: (0, 0)),       # VMEM-resident bias
            ],
            out_specs=pl.BlockSpec((TM, N_pad), lambda i: (i, 0)),
        ),
        compiler_params=pltpu.CompilerParams(
            dimension_semantics=("parallel",)),
        cost_estimate=pl.CostEstimate(
            flops=2 * M_pad * K_pad * N_pad,
            transcendentals=0,
            bytes_accessed=(M_pad * K_pad * 2          # bf16 patches
                            + K_pad * N_pad * 2        # bf16 weight
                            + N_pad * 4                # f32 bias
                            + M_pad * N_pad * out_itemsize)),
    )(patches, w_p, b_p)

    if M_pad != M or N_pad != N:
        out = out[:M, :N]
    return out.reshape(B, num_patches, N)


if __name__ == "__main__":
    # Small shapes consistent with the module: img_size=16, patch_size=4,
    # num_hiddens=32, channels=4 (LazyConv2d infers C from the input).
    B, C, H, W = 2, 4, 16, 16
    P = 4
    num_hiddens = 32

    key = jax.random.PRNGKey(0)
    kx, kw, kb = jax.random.split(key, 3)
    x = jax.random.normal(kx, (B, C, H, W), dtype=jnp.float32)
    # Deterministic synthetic conv params (PyTorch conv weight layout).
    weight = jax.random.normal(kw, (num_hiddens, C, P, P), dtype=jnp.float32) * 0.02
    bias = jax.random.normal(kb, (num_hiddens,), dtype=jnp.float32) * 0.02

    # One-time parameter prep (hoisted off the per-forward hot path).
    w_p, b_p = prepare_patch_embed_params(weight, bias)

    out = patch_embedding(x, w_p, b_p, patch_size=P, num_hiddens=num_hiddens)
    out = jax.block_until_ready(out)

    # Sanity check vs. plain-JAX f32 reference of the same math.
    hp, wp = H // P, W // P
    ref = x.reshape(B, C, hp, P, wp, P).transpose(0, 2, 4, 1, 3, 5)
    ref = ref.reshape(B, hp * wp, C * P * P) @ weight.reshape(num_hiddens, -1).T + bias
    assert out.shape == (B, hp * wp, num_hiddens)
    assert out.dtype == jnp.bfloat16
    # bf16 MXU operands + bf16 output (f32 accumulation) -> loosened tolerance.
    assert jnp.allclose(out.astype(jnp.float32), ref, atol=2e-2, rtol=2e-2)

    print("KERNEL_OK")
</pallas_src>

<mosaic_0001>
module attributes {stable_mosaic.version = 11 : i64} {
  func.func @_patch_embed_kernel(%arg0: i32, %arg1: memref<32x128xbf16, #tpu.memory_space<vmem>>, %arg2: memref<128x128xbf16, #tpu.memory_space<vmem>>, %arg3: memref<1x128xf32, #tpu.memory_space<vmem>>, %arg4: memref<32x128xbf16, #tpu.memory_space<vmem>>) attributes {dimension_semantics = [#tpu.dimension_semantics<parallel>], iteration_bounds = array<i64: 1>, scalar_prefetch = 0 : i64, scratch_operands = 0 : i64, tpu.core_type = #tpu.core_type<tc>, window_params = [{transform_indices = @transform_0, window_bounds = array<i64: 32, 128>}, {pipeline_mode = #tpu.pipeline_mode<synchronous>, transform_indices = @transform_1, window_bounds = array<i64: 128, 128>}, {pipeline_mode = #tpu.pipeline_mode<synchronous>, transform_indices = @transform_2, window_bounds = array<i64: 1, 128>}, {transform_indices = @transform_3, window_bounds = array<i64: 32, 128>}]} {
    %c0 = arith.constant 0 : index
    %c0_0 = arith.constant 0 : index
    %0 = vector.load %arg1[%c0, %c0_0] : memref<32x128xbf16, #tpu.memory_space<vmem>>, vector<32x128xbf16>
    %c0_1 = arith.constant 0 : index
    %c0_2 = arith.constant 0 : index
    %1 = vector.load %arg2[%c0_1, %c0_2] : memref<128x128xbf16, #tpu.memory_space<vmem>>, vector<128x128xbf16>
    %cst = arith.constant dense<0.000000e+00> : vector<32x128xf32>
    %2 = tpu.matmul %0, %1, %cst {dimension_numbers = #tpu.dot_dimension_numbers<[1], [0], [0], [1], [0, 0, 1, 1], [], []>} : vector<32x128xbf16>, vector<128x128xbf16>, vector<32x128xf32> -> vector<32x128xf32>
    %c0_3 = arith.constant 0 : index
    %c0_4 = arith.constant 0 : index
    %3 = vector.load %arg3[%c0_3, %c0_4] : memref<1x128xf32, #tpu.memory_space<vmem>>, vector<1x128xf32>
    %4 = vector.broadcast %3 : vector<1x128xf32> to vector<32x128xf32>
    %5 = arith.addf %2, %4 : vector<32x128xf32>
    %6 = arith.truncf %5 : vector<32x128xf32> to vector<32x128xbf16>
    %c0_5 = arith.constant 0 : index
    %c0_6 = arith.constant 0 : index
    %7 = vector.load %arg4[%c0_5, %c0_6] : memref<32x128xbf16, #tpu.memory_space<vmem>>, vector<32x128xbf16>
    tpu.vector_store %arg4[%c0_5, %c0_6], %6 {strides = array<i32>} : memref<32x128xbf16, #tpu.memory_space<vmem>>, vector<32x128xbf16>,
    return
  }
  func.func @transform_0(%arg0: i32) -> (i32, i32) {
    %c0_i32 = arith.constant 0 : i32
    %c0_i32_0 = arith.constant 0 : i32
    return %arg0, %c0_i32 : i32, i32
  }
  func.func @transform_1(%arg0: i32) -> (i32, i32) {
    %c0_i32 = arith.constant 0 : i32
    %c0_i32_0 = arith.constant 0 : i32
    %c0_i32_1 = arith.constant 0 : i32
    return %c0_i32, %c0_i32_0 : i32, i32
  }
  func.func @transform_2(%arg0: i32) -> (i32, i32) {
    %c0_i32 = arith.constant 0 : i32
    %c0_i32_0 = arith.constant 0 : i32
    %c0_i32_1 = arith.constant 0 : i32
    return %c0_i32, %c0_i32_0 : i32, i32
  }
  func.func @transform_3(%arg0: i32) -> (i32, i32) {
    %c0_i32 = arith.constant 0 : i32
    %c0_i32_0 = arith.constant 0 : i32
    return %arg0, %c0_i32 : i32, i32
  }
}

</mosaic_0001>

<llo_original>
// kernel: patch_embedding.1
$region0: #{patch_embedding.1}
  #allocation0 [shape = 'u32[]', space=smem, size = 0x4, offset = 0x4, fixed_abs, tag = 'smem constant byte address 0x4 - core index']
  #allocation1 [shape = 'u32[72,128]{1,0:T(1,128)}', space=vmem, size = 0x9000, scoped, tag = 'internal scratch']
  %s0 = inlined_call_operand.vmem [shape: bf16[32,128], index: 0, kind: input, shape index: {}]
  %s1 = inlined_call_operand.vmem [shape: bf16[128,128], index: 1, kind: input, shape index: {}]
  %s2 = inlined_call_operand.vmem [shape: f32[1,128], index: 2, kind: input, shape index: {}]
  %s3 = inlined_call_operand.hbm [shape: bf16[32,128], index: 3, kind: output, shape index: {}]
  %s4 = sld [smem:[#allocation0]]
  $region22: #{patch_embedding.1} parent=0
    _
  %s6 = ssub.s32 1, %s4
  %s7 = scalar_select 0, %s6, %s4
  $region1: #{patch_embedding.1} parent=0
    #allocation2 [shape = 'u8[8192]{0}', space=vmem, size = 0x2000, scoped, tag = 'output window, operand 0, single buffered']
    #allocation3 [shape = 's32[1]{0}', space=sflag, size = 0x4, scoped, tag = 'scoped memory for patch_embedding.1']
    %8 = vsyncpa [#allocation3], 0
    // Predicated region
    $region2: #{patch_embedding.1} parent=1 // pred_check
      _
    $region3: #{patch_embedding.1} parent=1 // pred_check_branch
      %10 = sbr.rel (0) target = $region5
    $region4: #{patch_embedding.1} parent=1 // pred_region
      _
    $region5: #{patch_embedding.1} parent=1 // pred_fallthru
      _
    // Predicated region
    $region6: #{patch_embedding.1} parent=1 // pred_check
      _
    $region7: #{patch_embedding.1} parent=1 // pred_check_branch
      %12 = sbr.rel (0) target = $region9
    $region8: #{patch_embedding.1} parent=1 // pred_region
      _
    $region9: #{patch_embedding.1} parent=1 // pred_fallthru
      _
    // Predicated region
    $region10: #{patch_embedding.1} parent=1 // pred_check
      _
    $region11: #{patch_embedding.1} parent=1 // pred_check_branch
      %14 = sbr.rel (0) target = $region13
    $region12: #{patch_embedding.1} parent=1 // pred_region
      _
    $region13: #{patch_embedding.1} parent=1 // pred_fallthru
      _
    %v15 = vld [vmem:[%s0] sm:$0xf]
    %v16 = vld [vmem:[%s0 + $0x4] sm:$0xf]
    %v17 = vld [vmem:[%s0 + $0x8] sm:$0xf]
    %v18 = vld [vmem:[%s0 + $0xc] sm:$0xf]
    %v19 = vld [vmem:[%s1] sm:$0xf]
    %v20 = vld [vmem:[%s1 + $0x4] sm:$0xf]
    %v21 = vld [vmem:[%s1 + $0x8] sm:$0xf]
    %v22 = vld [vmem:[%s1 + $0xc] sm:$0xf]
    %v23 = vld [vmem:[%s1 + $0x10] sm:$0xf]
    %v24 = vld [vmem:[%s1 + $0x14] sm:$0xf]
    %v25 = vld [vmem:[%s1 + $0x18] sm:$0xf]
    %v26 = vld [vmem:[%s1 + $0x1c] sm:$0xf]
    %v27 = vld [vmem:[%s1 + $0x20] sm:$0xf]
    %v28 = vld [vmem:[%s1 + $0x24] sm:$0xf]
    %v29 = vld [vmem:[%s1 + $0x28] sm:$0xf]
    %v30 = vld [vmem:[%s1 + $0x2c] sm:$0xf]
    %v31 = vld [vmem:[%s1 + $0x30] sm:$0xf]
    %v32 = vld [vmem:[%s1 + $0x34] sm:$0xf]
    %v33 = vld [vmem:[%s1 + $0x38] sm:$0xf]
    %v34 = vld [vmem:[%s1 + $0x3c] sm:$0xf]
    %v35 = vld [vmem:[%s2] sm:$0x1]
    %v37 = vperm.slane %v35, 0
    %v43 = vunpack.c.l.b16 %v15
    %v44 = vunpack.c.l.b16 %v16
    %v45 = vunpack.c.l.b16 %v17
    %v46 = vunpack.c.l.b16 %v18
    %v47 = vpack.c.b16 %v44, %v43
    %v48 = vpack.c.b16 %v46, %v45
    %v67 = vunpack.c.l.b16 %v19
    %v68 = vunpack.c.l.b16 %v20
    %v69 = vunpack.c.l.b16 %v21
    %v70 = vunpack.c.l.b16 %v22
    %v71 = vunpack.c.l.b16 %v23
    %v72 = vunpack.c.l.b16 %v24
    %v73 = vunpack.c.l.b16 %v25
    %v74 = vunpack.c.l.b16 %v26
    %v75 = vunpack.c.l.b16 %v27
    %v76 = vunpack.c.l.b16 %v28
    %v77 = vunpack.c.l.b16 %v29
    %v78 = vunpack.c.l.b16 %v30
    %v79 = vunpack.c.l.b16 %v31
    %v80 = vunpack.c.l.b16 %v32
    %v81 = vunpack.c.l.b16 %v33
    %v82 = vunpack.c.l.b16 %v34
    %v83 = vpack.c.b16 %v68, %v67
    %v84 = vpack.c.b16 %v70, %v69
    %v85 = vpack.c.b16 %v72, %v71
    %v86 = vpack.c.b16 %v74, %v73
    %v87 = vpack.c.b16 %v76, %v75
    %v88 = vpack.c.b16 %v78, %v77
    %v89 = vpack.c.b16 %v80, %v79
    %v90 = vpack.c.b16 %v82, %v81
    %99 = vmatpush.bf16.msra.mxu0 %v90
    %100 = vmatpush.bf16.msra.mxu0 %v89
    %101 = vmatpush.bf16.msra.mxu0 %v88
    %102 = vmatpush.bf16.msra.mxu0 %v87
    %103 = vmatpush.bf16.msra.mxu0 %v86
    %104 = vmatpush.bf16.msra.mxu0 %v85
    %105 = vmatpush.bf16.msra.mxu0 %v84
    %106 = vmatpush.bf16.msra.mxu0 %v83
    %107 = vmatmul.bf16.gmra.mxu0 %v47
    %v108 = vpop.f32.mrf.mxu0
    %v109 = vadd.f32 %v37, %v108
    %v110 = vpop.f32.mrf.mxu0
    %v111 = vadd.f32 %v37, %v110
    %112 = vmatmul.bf16.gmra.mxu0 %v48
    %v113 = vpop.f32.mrf.mxu0
    %v114 = vadd.f32 %v37, %v113
    %v115 = vpop.f32.mrf.mxu0
    %v116 = vadd.f32 %v37, %v115
    %117 = vdwg.mxu0
    %v118 = vpack.c.bf16 %v109, %v109
    %v119 = vpack.c.bf16 %v111, %v111
    %v120 = vpack.c.bf16 %v114, %v114
    %v121 = vpack.c.bf16 %v116, %v116
    %122 = vst [vmem:[#allocation2] sm:$0xf] %v118
    %123 = vst [vmem:[#allocation2 + $0x4] sm:$0xf] %v119
    %124 = vst [vmem:[#allocation2 + $0x8] sm:$0xf] %v120
    %125 = vst [vmem:[#allocation2 + $0xc] sm:$0xf] %v121
    // Predicated region
    $region14: #{patch_embedding.1} parent=1 // pred_check
      _
    $region15: #{patch_embedding.1} parent=1 // pred_check_branch
      %127 = sbr.rel (0) target = $region17
    $region16: #{patch_embedding.1} parent=1 // pred_region
      %129 = vsyncadd [#allocation3], 0
      %s130 = sshll.u32 [#allocation2], 4
      %s131 = int_to_ptr.vmem [resolvable:$true] %s130
      %s132 = sshll.u32 %s3, 4
      %s133 = int_to_ptr.hbm [resolvable:$true] %s132
      %138 = dma.vmem_to_hbm [thread:$0]  %s131, 256, %s133, [#allocation3], 64, 64, 4
    $region17: #{patch_embedding.1} parent=1 // pred_fallthru
      _
    // Predicated region
    $region18: #{patch_embedding.1} parent=1 // pred_check
      _
    $region19: #{patch_embedding.1} parent=1 // pred_check_branch
      %140 = sbr.rel (0) target = $region21
    $region20: #{patch_embedding.1} parent=1 // pred_region
      %142 = dma.done [#allocation3], 256
    $region21: #{patch_embedding.1} parent=1 // pred_fallthru
      _
    %143 = vsyncpa [#allocation3], 1

</llo_original>
